<compile_context>
chip_gen: v6e
topology: v6e:2x2x1
jax: 0.10.0
libtpu: 0.0.40
codegen_flags: <defaults>
</compile_context>

<pallas_src>
import functools

import jax
import jax.numpy as jnp
from jax.experimental import pallas as pl
from jax.experimental.pallas import tpu as pltpu


def _round_up(x, m):
    return (x + m - 1) // m * m


def _target_block_bytes():
    """Per-generation target for the scale-pass block size."""
    try:
        kind = jax.devices()[0].device_kind.lower()
    except Exception:
        return 2 << 20
    if "v5" in kind and ("lite" in kind or "v5e" in kind):
        return 1 << 20          # v5e: ~0.8 TB/s HBM, 16 MiB scoped default
    if "v7" in kind:
        return 4 << 20          # v7x: ~3.2 TB/s HBM, 64 MiB physical VMEM
    return 2 << 20              # v6e and default


def _derive_tiles(rows, hw, itemsize, target_bytes, row_align):
    """Lane-dense (mult of 128) spatial tile + sublane-aligned row tile <= target."""
    hw_full = _round_up(hw, 128)
    max_hw = max(128, (target_bytes // (row_align * itemsize)) // 128 * 128)
    hw_tile = min(hw_full, max_hw)
    max_rows = max(row_align, (target_bytes // (hw_tile * itemsize)) // row_align * row_align)
    row_tile = min(_round_up(rows, row_align), max_rows)
    return row_tile, hw_tile


# ---------------------------------------------------------------------------
# Fast path: one image per grid step, everything fused, x read once.
#   x_ref : (1, C, HW) native dtype     w1/w2 : (C, C) f32     o_ref : (1, C, HW)
# ---------------------------------------------------------------------------
def _fused_kernel(x_ref, w1_ref, w2_ref, o_ref, *, inv_hw):
    x = x_ref[0].astype(jnp.float32)                                   # (C, HW)
    mean = jnp.sum(x, axis=-1, keepdims=True) * inv_hw                 # (C, 1)
    h = jnp.maximum(
        jnp.dot(w1_ref[...], mean, preferred_element_type=jnp.float32), 0.0)
    a = jax.nn.sigmoid(
        jnp.dot(w2_ref[...], h, preferred_element_type=jnp.float32))   # (C, 1)
    o_ref[0] = (x * a).astype(o_ref.dtype)


# ---------------------------------------------------------------------------
# General path, pass 1: per-(n, c) spatial sums (f32 accumulation).
# Grid = (row tiles "parallel", spatial tiles "arbitrary"); output block is
# revisited across the spatial axis and acts as the resident accumulator.
# ---------------------------------------------------------------------------
def _pool_kernel(x_ref, s_ref, *, hw, hw_tile, need_mask):
    @pl.when(pl.program_id(1) == 0)
    def _():
        s_ref[...] = jnp.zeros_like(s_ref)

    x = x_ref[...].astype(jnp.float32)
    if need_mask:  # ragged last spatial tile: zero out-of-bounds lanes
        col = pl.program_id(1) * hw_tile + jax.lax.broadcasted_iota(
            jnp.int32, x.shape, 1)
        x = jnp.where(col < hw, x, 0.0)
    s_ref[...] += jnp.sum(x, axis=-1, keepdims=True)


# ---------------------------------------------------------------------------
# General path, pass 3: lane-dense rescale, out[r, :] = x[r, :] * a[r].
# Ragged edge stores are masked/dropped by Pallas automatically.
# ---------------------------------------------------------------------------
def _scale_kernel(x_ref, a_ref, o_ref):
    o_ref[...] = (x_ref[...] * a_ref[...]).astype(o_ref.dtype)


def ca_layer(x_nchw, w1, w2, *, fast_path_max_bytes=4 << 20, max_block_bytes=None):
    """Channel-attention layer.

    x_nchw: (N, C, H, W), any float dtype (kept native in HBM).
    w1, w2: (C, C) -- squeezed 1x1 conv weights (C_out, C_in), bias-free.
    """
    N, C, H, W = x_nchw.shape
    HW = H * W
    R = N * C
    dtype = x_nchw.dtype
    itemsize = jnp.dtype(dtype).itemsize
    inv_hw = float(1.0 / HW)

    w1f = w1.astype(jnp.float32)
    w2f = w2.astype(jnp.float32)

    # ---------------- fast path: per-image slab resident in VMEM ----------------
    if C * HW * itemsize <= fast_path_max_bytes and fast_path_max_bytes > 0:
        x3 = x_nchw.reshape(N, C, HW)                       # free view
        blk = C * HW * itemsize
        vmem = max(int(4 * blk * 1.2) + 2 * C * C * 4 + (2 << 20), 8 << 20)
        out3 = pl.pallas_call(
            functools.partial(_fused_kernel, inv_hw=inv_hw),
            out_shape=jax.ShapeDtypeStruct((N, C, HW), dtype),
            grid_spec=pltpu.PrefetchScalarGridSpec(
                num_scalar_prefetch=0,
                grid=(N,),
                in_specs=[
                    pl.BlockSpec((1, C, HW), lambda n: (n, 0, 0)),
                    pl.BlockSpec((C, C), lambda n: (0, 0)),
                    pl.BlockSpec((C, C), lambda n: (0, 0)),
                ],
                out_specs=pl.BlockSpec((1, C, HW), lambda n: (n, 0, 0)),
            ),
            compiler_params=pltpu.CompilerParams(
                dimension_semantics=("parallel",),
                vmem_limit_bytes=vmem),
            # TODO(synk): add input_output_aliases={0: 0} when callers can donate x.
        )(x3, w1f, w2f)
        return out3.reshape(N, C, H, W)

    # ---------------- general tiled path (large activations) --------------------
    target = max_block_bytes if max_block_bytes is not None else _target_block_bytes()
    row_align = max(8, 32 // itemsize)                       # (8,128) f32 / (16,128) bf16
    x2d = x_nchw.reshape(R, HW)                              # free view, native dtype

    # Pass 1: pool (2x spatial budget -- only double-buffered input + tiny output).
    row_tile1, hw_tile1 = _derive_tiles(R, HW, itemsize, 2 * target, row_align)
    grid1 = (pl.cdiv(R, row_tile1), pl.cdiv(HW, hw_tile1))
    need_mask = (HW % hw_tile1) != 0
    blk1 = row_tile1 * hw_tile1 * itemsize
    vmem1 = max(int(2 * blk1 * 1.2) + (2 << 20), 8 << 20)

    sums = pl.pallas_call(
        functools.partial(_pool_kernel, hw=HW, hw_tile=hw_tile1, need_mask=need_mask),
        out_shape=jax.ShapeDtypeStruct((R, 1), jnp.float32),
        grid_spec=pltpu.PrefetchScalarGridSpec(
            num_scalar_prefetch=0,
            grid=grid1,
            in_specs=[pl.BlockSpec((row_tile1, hw_tile1), lambda i, j: (i, j))],
            out_specs=pl.BlockSpec((row_tile1, 1), lambda i, j: (i, 0)),
        ),
        compiler_params=pltpu.CompilerParams(
            dimension_semantics=("parallel", "arbitrary"),
            vmem_limit_bytes=vmem1),
    )(x2d)

    # Pass 2: microscopic channel MLP in plain XLA (no dedicated kernel launch).
    mean = sums.reshape(N, C) * inv_hw
    h = jnp.maximum(mean @ w1f.T, 0.0)
    a_rows = jax.nn.sigmoid(h @ w2f.T).reshape(R, 1)

    # Pass 3: rescale x by its per-(n, c) attention weight.
    row_tile, hw_tile = _derive_tiles(R, HW, itemsize, target, row_align)
    grid3 = (pl.cdiv(R, row_tile), pl.cdiv(HW, hw_tile))
    blk3 = row_tile * hw_tile * itemsize
    vmem3 = max(int(4 * blk3 * 1.2) + (2 << 20), 8 << 20)

    out2d = pl.pallas_call(
        _scale_kernel,
        out_shape=jax.ShapeDtypeStruct((R, HW), dtype),
        grid_spec=pltpu.PrefetchScalarGridSpec(
            num_scalar_prefetch=0,
            grid=grid3,
            in_specs=[
                pl.BlockSpec((row_tile, hw_tile), lambda i, j: (i, j)),
                pl.BlockSpec((row_tile, 1), lambda i, j: (i, 0)),
            ],
            out_specs=pl.BlockSpec((row_tile, hw_tile), lambda i, j: (i, j)),
        ),
        compiler_params=pltpu.CompilerParams(
            dimension_semantics=("parallel", "parallel"),
            vmem_limit_bytes=vmem3),
        # TODO(synk): add input_output_aliases={0: 0} when callers can donate x.
    )(x2d, a_rows)

    return out2d.reshape(N, C, H, W)


def _reference(x, w1, w2):
    s = jnp.mean(x.astype(jnp.float32), axis=(2, 3))           # (N, C)
    h = jnp.maximum(jnp.einsum('oc,nc->no', w1, s), 0.0)       # 1x1 conv + ReLU
    a = jax.nn.sigmoid(jnp.einsum('oc,nc->no', w2, h))         # 1x1 conv + Sigmoid
    return (x.astype(jnp.float32) * a[:, :, None, None]).astype(x.dtype)


if __name__ == "__main__":
    key = jax.random.PRNGKey(0)
    kx, k1, k2, kx2 = jax.random.split(key, 4)

    # --- Test 1: fused fast path (module's natural small-activation regime) ---
    N, C, H, W = 2, 4, 16, 16
    x = jax.random.normal(kx, (N, C, H, W), dtype=jnp.float32)
    bound = 1.0 / (C ** 0.5)
    w1 = jax.random.uniform(k1, (C, C), jnp.float32, -bound, bound)
    w2 = jax.random.uniform(k2, (C, C), jnp.float32, -bound, bound)

    out = jax.block_until_ready(ca_layer(x, w1, w2))
    ref = _reference(x, w1, w2)
    assert out.shape == x.shape and out.dtype == x.dtype
    err = float(jnp.max(jnp.abs(out - ref)))
    assert jnp.allclose(out, ref, atol=1e-5, rtol=1e-5), f"fast-path max abs err {err}"

    # --- Test 2: tiled general path with ragged row + spatial tiles ---
    N2, C2, H2, W2 = 3, 5, 17, 19
    x2 = jax.random.normal(kx2, (N2, C2, H2, W2), dtype=jnp.float32)
    b2 = 1.0 / (C2 ** 0.5)
    w1b = jax.random.uniform(k1, (C2, C2), jnp.float32, -b2, b2)
    w2b = jax.random.uniform(k2, (C2, C2), jnp.float32, -b2, b2)

    out2 = jax.block_until_ready(
        ca_layer(x2, w1b, w2b, fast_path_max_bytes=0, max_block_bytes=4096))
    ref2 = _reference(x2, w1b, w2b)
    err2 = float(jnp.max(jnp.abs(out2 - ref2)))
    assert jnp.allclose(out2, ref2, atol=1e-5, rtol=1e-5), f"tiled-path max abs err {err2}"

    print("KERNEL_OK")
</pallas_src>

<mosaic_0001>
module attributes {stable_mosaic.version = 11 : i64} {
  func.func @_fused_kernel(%arg0: i32, %arg1: memref<1x4x256xf32, #tpu.memory_space<vmem>>, %arg2: memref<4x4xf32, #tpu.memory_space<vmem>>, %arg3: memref<4x4xf32, #tpu.memory_space<vmem>>, %arg4: memref<1x4x256xf32, #tpu.memory_space<vmem>>) attributes {dimension_semantics = [#tpu.dimension_semantics<parallel>], iteration_bounds = array<i64: 2>, scalar_prefetch = 0 : i64, scratch_operands = 0 : i64, tpu.core_type = #tpu.core_type<tc>, window_params = [{transform_indices = @transform_0, window_bounds = array<i64: 1, 4, 256>}, {pipeline_mode = #tpu.pipeline_mode<synchronous>, transform_indices = @transform_1, window_bounds = array<i64: 4, 4>}, {pipeline_mode = #tpu.pipeline_mode<synchronous>, transform_indices = @transform_2, window_bounds = array<i64: 4, 4>}, {transform_indices = @transform_3, window_bounds = array<i64: 1, 4, 256>}]} {
    %c0 = arith.constant 0 : index
    %c0_0 = arith.constant 0 : index
    %c0_1 = arith.constant 0 : index
    %0 = vector.load %arg1[%c0, %c0_0, %c0_1] : memref<1x4x256xf32, #tpu.memory_space<vmem>>, vector<1x4x256xf32>
    %1 = vector.shape_cast %0 : vector<1x4x256xf32> to vector<4x256xf32>
    %cst = arith.constant dense<0.000000e+00> : vector<4xf32>
    %2 = vector.multi_reduction <add>, %1, %cst [1] : vector<4x256xf32> to vector<4xf32>
    %3 = vector.shape_cast %2 : vector<4xf32> to vector<4x1xf32>
    %cst_2 = arith.constant 3.906250e-03 : f32
    %4 = vector.broadcast %cst_2 : f32 to vector<4x1xf32>
    %5 = arith.mulf %3, %4 : vector<4x1xf32>
    %c0_3 = arith.constant 0 : index
    %c0_4 = arith.constant 0 : index
    %6 = vector.load %arg2[%c0_3, %c0_4] : memref<4x4xf32, #tpu.memory_space<vmem>>, vector<4x4xf32>
    %cst_5 = arith.constant dense<0.000000e+00> : vector<4x1xf32>
    %7 = tpu.matmul %6, %5, %cst_5 {dimension_numbers = #tpu.dot_dimension_numbers<[1], [0], [0], [1], [0, 0, 1, 1], [], []>} : vector<4x4xf32>, vector<4x1xf32>, vector<4x1xf32> -> vector<4x1xf32>
    %cst_6 = arith.constant 0.000000e+00 : f32
    %8 = vector.broadcast %cst_6 : f32 to vector<4x1xf32>
    %9 = arith.maximumf %7, %8 : vector<4x1xf32>
    %c0_7 = arith.constant 0 : index
    %c0_8 = arith.constant 0 : index
    %10 = vector.load %arg3[%c0_7, %c0_8] : memref<4x4xf32, #tpu.memory_space<vmem>>, vector<4x4xf32>
    %cst_9 = arith.constant dense<0.000000e+00> : vector<4x1xf32>
    %11 = tpu.matmul %10, %9, %cst_9 {dimension_numbers = #tpu.dot_dimension_numbers<[1], [0], [0], [1], [0, 0, 1, 1], [], []>} : vector<4x4xf32>, vector<4x1xf32>, vector<4x1xf32> -> vector<4x1xf32>
    %12 = arith.negf %11 : vector<4x1xf32>
    %13 = math.exp %12 : vector<4x1xf32>
    %cst_10 = arith.constant 1.000000e+00 : f32
    %14 = vector.broadcast %cst_10 : f32 to vector<4x1xf32>
    %15 = arith.addf %14, %13 : vector<4x1xf32>
    %16 = arith.divf %14, %15 : vector<4x1xf32>
    %17 = vector.broadcast %16 : vector<4x1xf32> to vector<4x256xf32>
    %18 = arith.mulf %1, %17 : vector<4x256xf32>
    %c0_11 = arith.constant 0 : index
    %c0_12 = arith.constant 0 : index
    %c0_13 = arith.constant 0 : index
    %19 = vector.load %arg4[%c0_11, %c0_12, %c0_13] : memref<1x4x256xf32, #tpu.memory_space<vmem>>, vector<1x4x256xf32>
    %20 = vector.shape_cast %19 : vector<1x4x256xf32> to vector<4x256xf32>
    %21 = vector.shape_cast %18 : vector<4x256xf32> to vector<1x4x256xf32>
    tpu.vector_store %arg4[%c0_11, %c0_12, %c0_13], %21 {strides = array<i32>} : memref<1x4x256xf32, #tpu.memory_space<vmem>>, vector<1x4x256xf32>,
    return
  }
  func.func @transform_0(%arg0: i32) -> (i32, i32, i32) {
    %c0_i32 = arith.constant 0 : i32
    %c0_i32_0 = arith.constant 0 : i32
    %c0_i32_1 = arith.constant 0 : i32
    return %arg0, %c0_i32, %c0_i32_0 : i32, i32, i32
  }
  func.func @transform_1(%arg0: i32) -> (i32, i32) {
    %c0_i32 = arith.constant 0 : i32
    %c0_i32_0 = arith.constant 0 : i32
    %c0_i32_1 = arith.constant 0 : i32
    return %c0_i32, %c0_i32_0 : i32, i32
  }
  func.func @transform_2(%arg0: i32) -> (i32, i32) {
    %c0_i32 = arith.constant 0 : i32
    %c0_i32_0 = arith.constant 0 : i32
    %c0_i32_1 = arith.constant 0 : i32
    return %c0_i32, %c0_i32_0 : i32, i32
  }
  func.func @transform_3(%arg0: i32) -> (i32, i32, i32) {
    %c0_i32 = arith.constant 0 : i32
    %c0_i32_0 = arith.constant 0 : i32
    %c0_i32_1 = arith.constant 0 : i32
    return %arg0, %c0_i32, %c0_i32_0 : i32, i32, i32
  }
}

</mosaic_0001>

<llo_original>
// kernel: tpu_custom_call.1
$region0: #{tpu_custom_call.1}
  #allocation0 [shape = 'u32[]', space=smem, size = 0x4, offset = 0x4, fixed_abs, tag = 'smem constant byte address 0x4 - core index']
  #allocation1 [shape = 'u32[144,128]{1,0:T(1,128)}', space=vmem, size = 0x12000, scoped, tag = 'internal scratch']
  %s0 = inlined_call_operand.hbm [shape: f32[2,4,256], index: 0, kind: input, shape index: {}]
  %s1 = inlined_call_operand.hbm [shape: f32[4,4], index: 1, kind: input, shape index: {}]
  %s2 = inlined_call_operand.hbm [shape: f32[4,4], index: 2, kind: input, shape index: {}]
  %s3 = inlined_call_operand.hbm [shape: f32[2,4,256], index: 3, kind: output, shape index: {}]
  %s4 = sld [smem:[#allocation0]]
  $region57: #{tpu_custom_call.1} parent=0
    _
  %s6 = ssub.s32 1, %s4
  %s7 = scalar_select 0, %s6, %s4
  $region1: #{tpu_custom_call.1} parent=0
    #allocation2 [shape = 'u8[8192]{0}', space=vmem, size = 0x2000, scoped, tag = 'input window, operand 0']
    #allocation3 [shape = 's32[2]{0}', space=sflag, size = 0x8, scoped, tag = 'scoped memory for tpu_custom_call.1']
    #allocation4 [shape = 's32[2]{0}', space=sflag, size = 0x8, scoped, tag = 'scoped memory for tpu_custom_call.1']
    #allocation5 [shape = 'u8[2048]{0}', space=vmem, size = 0x800, scoped, tag = 'input window, operand 1, single buffered']
    #allocation6 [shape = 's32[1]{0}', space=sflag, size = 0x4, scoped, tag = 'scoped memory for tpu_custom_call.1']
    #allocation7 [shape = 'u8[2048]{0}', space=vmem, size = 0x800, scoped, tag = 'input window, operand 2, single buffered']
    #allocation8 [shape = 'u8[8192]{0}', space=vmem, size = 0x2000, scoped, tag = 'output window, operand 0']
    %8 = vsyncpa [#allocation3], 0
    %s9 = scalar_lea.sflag [#allocation3], 1
    %10 = vsyncpa %s9, 0
    %11 = vsyncpa [#allocation6], 0
    %12 = vsyncpa [#allocation4], 0
    %s13 = scalar_lea.sflag [#allocation4], 1
    %14 = vsyncpa %s13, 0
    loop: start=0, step=1, limit=4
    $region2: #{tpu_custom_call.1} parent=1 // loop_pre_header
      _
    $region3: #{tpu_custom_call.1} parent=1 // loop_header
      %s16 = sphi 0, %s20
      %p17 = scmp.ge.s32.totalorder %s16, 4
      %s26 = sphi 0, %s28
      %s29 = sphi 0, %s26
      %s30 = sphi 0, %s29
      %s46 = sphi 0, %s30
      %s50 = sphi 0, %s50
      %s52 = sphi 0, %s50
      %s53 = sphi 0, %s52
      %s67 = sphi 0, %s53
      %s71 = sphi 0, %s71
      %s73 = sphi 0, %s71
      %s74 = sphi 0, %s73
      %s88 = sphi 0, %s74
      %s94 = sphi 0, %s96
      %s97 = sphi 0, %s94
      %s98 = sphi 0, %s97
      %s114 = sphi 0, %s98
    $region4: #{tpu_custom_call.1} parent=1 // loop_header_branch
      %19 = sbr.rel (%p17) target = $region8
    $region5: #{tpu_custom_call.1} parent=1 // loop_body
      %s21 = ssub.s32 %s16, 1
      %s22 = ssub.s32 %s16, 2
      %s23 = sadd.s32 %s16, 1
      %s24 = ssub.s32 %s16, %s23
      %p25 = scmp.eq.s32.totalorder %s24, 0
      %s27 = sadd.s32 %s26, 1
      %s28 = scalar_select %p25, %s26, %s27
      %p31 = pneg %p25
      %p32 = scmp.eq.s32.totalorder %s16, 1
      %p33 = por %p31, %p32
      %p34 = scmp.ne.s32.totalorder %s26, %s29
      %p35 = scmp.eq.s32.totalorder %s16, 0
      %p36 = por %p34, %p35
      %p37 = scmp.ne.s32.totalorder %s26, %s29
      %p38 = scmp.eq.s32.totalorder %s21, 1
      %p39 = por %p37, %p38
      %p40 = scmp.ne.s32.totalorder %s29, %s30
      %p41 = scmp.eq.s32.totalorder %s21, 0
      %p42 = por %p40, %p41
      %p43 = scmp.ne.s32.totalorder %s29, %s30
      %p44 = scmp.eq.s32.totalorder %s22, 1
      %p45 = por %p43, %p44
      %p47 = scmp.ne.s32.totalorder %s30, %s46
      %p48 = scmp.eq.s32.totalorder %s22, 0
      %p49 = por %p47, %p48
      %s51 = sadd.s32 %s50, 1
      %p54 = scmp.eq.s32.totalorder %s16, 1
      %p55 = scmp.ne.s32.totalorder %s50, %s52
      %p56 = scmp.eq.s32.totalorder %s16, 0
      %p57 = por %p55, %p56
      %p58 = scmp.ne.s32.totalorder %s50, %s52
      %p59 = scmp.eq.s32.totalorder %s21, 1
      %p60 = por %p58, %p59
      %p61 = scmp.ne.s32.totalorder %s52, %s53
      %p62 = scmp.eq.s32.totalorder %s21, 0
      %p63 = por %p61, %p62
      %p64 = scmp.ne.s32.totalorder %s52, %s53
      %p65 = scmp.eq.s32.totalorder %s22, 1
      %p66 = por %p64, %p65
      %p68 = scmp.ne.s32.totalorder %s53, %s67
      %p69 = scmp.eq.s32.totalorder %s22, 0
      %p70 = por %p68, %p69
      %s72 = sadd.s32 %s71, 1
      %p75 = scmp.eq.s32.totalorder %s16, 1
      %p76 = scmp.ne.s32.totalorder %s71, %s73
      %p77 = scmp.eq.s32.totalorder %s16, 0
      %p78 = por %p76, %p77
      %p79 = scmp.ne.s32.totalorder %s71, %s73
      %p80 = scmp.eq.s32.totalorder %s21, 1
      %p81 = por %p79, %p80
      %p82 = scmp.ne.s32.totalorder %s73, %s74
      %p83 = scmp.eq.s32.totalorder %s21, 0
      %p84 = por %p82, %p83
      %p85 = scmp.ne.s32.totalorder %s73, %s74
      %p86 = scmp.eq.s32.totalorder %s22, 1
      %p87 = por %p85, %p86
      %p89 = scmp.ne.s32.totalorder %s74, %s88
      %p90 = scmp.eq.s32.totalorder %s22, 0
      %p91 = por %p89, %p90
      %s92 = ssub.s32 %s16, %s23
      %p93 = scmp.eq.s32.totalorder %s92, 0
      %s95 = sadd.s32 %s94, 1
      %s96 = scalar_select %p93, %s94, %s95
      %p99 = pneg %p93
      %p100 = scmp.eq.s32.totalorder %s16, 1
      %p101 = por %p99, %p100
      %p102 = scmp.ne.s32.totalorder %s94, %s97
      %p103 = scmp.eq.s32.totalorder %s16, 0
      %p104 = por %p102, %p103
      %p105 = scmp.ne.s32.totalorder %s94, %s97
      %p106 = scmp.eq.s32.totalorder %s21, 1
      %p107 = por %p105, %p106
      %p108 = scmp.ne.s32.totalorder %s97, %s98
      %p109 = scmp.eq.s32.totalorder %s21, 0
      %p110 = por %p108, %p109
      %p111 = scmp.ne.s32.totalorder %s97, %s98
      %p112 = scmp.eq.s32.totalorder %s22, 1
      %p113 = por %p111, %p112
      %p115 = scmp.ne.s32.totalorder %s98, %s114
      %p116 = scmp.eq.s32.totalorder %s22, 0
      %p117 = por %p115, %p116
      %p118 = scmp.le.s32.totalorder 1, %s16
      %p119 = scmp.lt.s32.totalorder %s16, 3
      %p120 = pnand %p118, %p119
      %p121 = pneg %p120
      // Predicated region
      $region9: #{tpu_custom_call.1} parent=5 // pred_check
        _
      $region10: #{tpu_custom_call.1} parent=5 // pred_check_branch
        %123 = sbr.rel (%p120) target = $region12
      $region11: #{tpu_custom_call.1} parent=5 // pred_region
        %s124 = ssub.s32 %s16, 1
        // Predicated region
        $region13: #{tpu_custom_call.1} parent=11 // pred_check
          %p125 = pneg %p63
        $region14: #{tpu_custom_call.1} parent=11 // pred_check_branch
          %127 = sbr.rel (%p125) target = $region16
        $region15: #{tpu_custom_call.1} parent=11 // pred_region
          %s129 = ssub.s32 64, 64
          %130 = vsyncadd [#allocation6], %s129
          %s132 = sshll.u32 [#allocation5], 4
          %s133 = int_to_ptr.vmem [resolvable:$true] %s132
          %135 = dma.hbm_to_vmem [thread:$0]  %s1, 64, %s133, [#allocation6]
        $region16: #{tpu_custom_call.1} parent=11 // pred_fallthru
          _
        // Predicated region
        $region17: #{tpu_custom_call.1} parent=11 // pred_check
          %p136 = pneg %p84
        $region18: #{tpu_custom_call.1} parent=11 // pred_check_branch
          %138 = sbr.rel (%p136) target = $region20
        $region19: #{tpu_custom_call.1} parent=11 // pred_region
          %s140 = ssub.s32 64, 64
          %141 = vsyncadd [#allocation6], %s140
          %s143 = sshll.u32 [#allocation7], 4
          %s144 = int_to_ptr.vmem [resolvable:$true] %s143
          %146 = dma.hbm_to_vmem [thread:$0]  %s2, 64, %s144, [#allocation6]
        $region20: #{tpu_custom_call.1} parent=11 // pred_fallthru
          _
      $region12: #{tpu_custom_call.1} parent=5 // pred_fallthru
        _
      %p147 = scmp.lt.s32.totalorder %s16, 2
      // Predicated region
      $region21: #{tpu_custom_call.1} parent=5 // pred_check
        %p148 = pneg %p147
      $region22: #{tpu_custom_call.1} parent=5 // pred_check_branch
        %150 = sbr.rel (%p148) target = $region24
      $region23: #{tpu_custom_call.1} parent=5 // pred_region
        // Predicated region
        $region25: #{tpu_custom_call.1} parent=23 // pred_check
          %p151 = pneg %p36
        $region26: #{tpu_custom_call.1} parent=23 // pred_check_branch
          %153 = sbr.rel (%p151) target = $region28
        $region27: #{tpu_custom_call.1} parent=23 // pred_region
          %s154 = sand.u32 %s26, 1
          %s155 = scalar_lea.sflag [#allocation3], %s154
          %s156 = sand.u32 %s26, 1
          %s157 = smul.addr %s156, 8
          %s158 = scalar_lea.vmem [#allocation2], %s157
          %s160 = ssub.s32 128, 128
          %161 = vsyncadd %s155, %s160
          %s162 = smul.addr %s16, 2
          %s163 = smul.addr %s162, 64
          %s164 = scalar_lea.hbm %s0, %s163
          %s166 = sshll.u32 %s158, 4
          %s167 = int_to_ptr.vmem [resolvable:$true] %s166
          %169 = dma.hbm_to_vmem [thread:$0]  %s164, 128, %s167, %s155
        $region28: #{tpu_custom_call.1} parent=23 // pred_fallthru
          _
      $region24: #{tpu_custom_call.1} parent=5 // pred_fallthru
        _
      %p170 = scmp.le.s32.totalorder 1, %s16
      %p171 = scmp.lt.s32.totalorder %s16, 3
      %p172 = pnand %p170, %p171
      %p173 = pneg %p172
      // Predicated region
      $region29: #{tpu_custom_call.1} parent=5 // pred_check
        _
      $region30: #{tpu_custom_call.1} parent=5 // pred_check_branch
        %175 = sbr.rel (%p172) target = $region32
      $region31: #{tpu_custom_call.1} parent=5 // pred_region
        %s176 = ssub.s32 %s16, 1
        %s177 = sand.u32 %s29, 1
        %s178 = scalar_lea.sflag [#allocation3], %s177
        %s179 = sand.u32 %s29, 1
        %s180 = smul.addr %s179, 8
        %s181 = scalar_lea.vmem [#allocation2], %s180
        // Predicated region
        $region33: #{tpu_custom_call.1} parent=31 // pred_check
          %p182 = pneg %p42
        $region34: #{tpu_custom_call.1} parent=31 // pred_check_branch
          %184 = sbr.rel (%p182) target = $region36
        $region35: #{tpu_custom_call.1} parent=31 // pred_region
          %185 = dma.done %s178, 128
        $region36: #{tpu_custom_call.1} parent=31 // pred_fallthru
          _
        // Predicated region
        $region37: #{tpu_custom_call.1} parent=31 // pred_check
          %p186 = pneg %p63
        $region38: #{tpu_custom_call.1} parent=31 // pred_check_branch
          %188 = sbr.rel (%p186) target = $region40
        $region39: #{tpu_custom_call.1} parent=31 // pred_region
          %189 = dma.done [#allocation6], 64
        $region40: #{tpu_custom_call.1} parent=31 // pred_fallthru
          _
        // Predicated region
        $region41: #{tpu_custom_call.1} parent=31 // pred_check
          %p190 = pneg %p84
        $region42: #{tpu_custom_call.1} parent=31 // pred_check_branch
          %192 = sbr.rel (%p190) target = $region44
        $region43: #{tpu_custom_call.1} parent=31 // pred_region
          %193 = dma.done [#allocation6], 64
        $region44: #{tpu_custom_call.1} parent=31 // pred_fallthru
          _
        %s194 = sand.u32 %s29, 1
        %s195 = scalar_lea.sflag [#allocation3], %s194
        %s196 = sand.u32 %s29, 1
        %s197 = smul.addr %s196, 8
        %s198 = scalar_lea.vmem [#allocation2], %s197
        %p199 = pneg %p42
        %p200 = pneg %p39
        %p201 = pneg %p63
        %p202 = pneg %p60
        %p203 = pneg %p84
        %p204 = pneg %p81
        %p205 = pneg %p110
        %p206 = pneg %p107
        %s207 = sand.u32 %s97, 1
        %s208 = scalar_lea.sflag [#allocation4], %s207
        %s209 = sand.u32 %s97, 1
        %s210 = smul.addr %s209, 8
        %s211 = scalar_lea.vmem [#allocation8], %s210
        %v212 = vld [vmem:[%s181] sm:$0xff]
        %v214 = vcombine.high %v212, %v212
        %vm216 = vcmask 1043456
        %v217 = vsel %vm216, %v212, 0.0
        %v218 = vsel %vm216, %v214, 0.0
        %v219 = vadd.f32 %v217, %v218
        %220 = vadd.xlane.f32.xlu0 %v219
        %v221 = vpop.xlane.xlu0 %220
        %v222 = vmul.f32 %v221, 0.00390625
        %v223 = vld [vmem:[#allocation5] sm:$0xf]
        %vm224 = vcmask 31744
        %v226 = vsel %vm224, %v223, 0
        %v229 = vsel %vm216, %v222, 0
        %231 = vmatprep.subr.mxu0 0.0
        %232 = vmatpush1.msra.mxu0 0.0
        %233 = vmatprep.subr.mxu0 0.0
        %234 = vmatpush1.msra.mxu0 0.0
        %235 = vmatprep.subr.mxu0 0.0
        %236 = vmatpush1.msra.mxu0 0.0
        %237 = vmatprep.subr.mxu0 0.0
        %238 = vmatpush1.msra.mxu0 0.0
        %239 = vmatprep.subr.mxu0 0.0
        %240 = vmatpush1.msra.mxu0 0.0
        %241 = vmatprep.subr.mxu0 0.0
        %242 = vmatpush1.msra.mxu0 0.0
        %243 = vmatprep.subr.mxu0 0.0
        %244 = vmatpush1.msra.mxu0 0.0
        %245 = vmatprep.subr.mxu0 0.0
        %246 = vmatpush1.msra.mxu0 0.0
        %247 = vmatprep.subr.mxu0 0.0
        %248 = vmatpush1.msra.mxu0 0.0
        %249 = vmatprep.subr.mxu0 0.0
        %250 = vmatpush1.msra.mxu0 0.0
        %251 = vmatprep.subr.mxu0 0.0
        %252 = vmatpush1.msra.mxu0 0.0
        %253 = vmatprep.subr.mxu0 0.0
        %254 = vmatpush1.msra.mxu0 0.0
        %255 = vmatprep.subr.mxu0 0.0
        %256 = vmatpush1.msra.mxu0 0.0
        %257 = vmatprep.subr.mxu0 0.0
        %258 = vmatpush1.msra.mxu0 0.0
        %259 = vmatprep.subr.mxu0 0.0
        %260 = vmatpush1.msra.mxu0 0.0
        %261 = vmatprep.subr.mxu0 0.0
        %262 = vmatpush1.msra.mxu0 %v229
        %263 = vmatprep.subr.mxu0 0.0
        %264 = vmatpush2.msra.mxu0 0.0
        %265 = vmatprep.subr.mxu0 0.0
        %266 = vmatpush2.msra.mxu0 0.0
        %267 = vmatprep.subr.mxu0 0.0
        %268 = vmatpush2.msra.mxu0 0.0
        %269 = vmatprep.subr.mxu0 0.0
        %270 = vmatpush2.msra.mxu0 0.0
        %271 = vmatprep.subr.mxu0 0.0
        %272 = vmatpush2.msra.mxu0 0.0
        %273 = vmatprep.subr.mxu0 0.0
        %274 = vmatpush2.msra.mxu0 0.0
        %275 = vmatprep.subr.mxu0 0.0
        %276 = vmatpush2.msra.mxu0 0.0
        %277 = vmatprep.subr.mxu0 0.0
        %278 = vmatpush2.msra.mxu0 0.0
        %279 = vmatprep.subr.mxu0 0.0
        %280 = vmatpush2.msra.mxu0 0.0
        %281 = vmatprep.subr.mxu0 0.0
        %282 = vmatpush2.msra.mxu0 0.0
        %283 = vmatprep.subr.mxu0 0.0
        %284 = vmatpush2.msra.mxu0 0.0
        %285 = vmatprep.subr.mxu0 0.0
        %286 = vmatpush2.msra.mxu0 0.0
        %287 = vmatprep.subr.mxu0 0.0
        %288 = vmatpush2.msra.mxu0 0.0
        %289 = vmatprep.subr.mxu0 0.0
        %290 = vmatpush2.msra.mxu0 0.0
        %291 = vmatprep.subr.mxu0 0.0
        %292 = vmatpush2.msra.mxu0 0.0
        %293 = vmatprep.subr.mxu0 0.0
        %294 = vmatpush2.msra.mxu0 0.0
        %295 = vmatprep.mubr.f32.mxu0 0.0
        %296 = vmatmul.mubr.f32.gmra.mxu0 %v226
        %v297 = vpop.f32.mrf.mxu0
        %v298 = vadd.f32 0.0, %v297
        %v299 = vpop.f32.mrf.mxu0
        %300 = vdwg.mxu0
        %v301 = vmax.f32 %v298, 0.0
        %v302 = vld [vmem:[#allocation7] sm:$0xf]
        %v304 = vsel %vm224, %v302, 0
        %v307 = vsel %vm216, %v301, 0
        %309 = vmatprep.subr.mxu0 0.0
        %310 = vmatpush1.msra.mxu0 0.0
        %311 = vmatprep.subr.mxu0 0.0
        %312 = vmatpush1.msra.mxu0 0.0
        %313 = vmatprep.subr.mxu0 0.0
        %314 = vmatpush1.msra.mxu0 0.0
        %315 = vmatprep.subr.mxu0 0.0
        %316 = vmatpush1.msra.mxu0 0.0
        %317 = vmatprep.subr.mxu0 0.0
        %318 = vmatpush1.msra.mxu0 0.0
        %319 = vmatprep.subr.mxu0 0.0
        %320 = vmatpush1.msra.mxu0 0.0
        %321 = vmatprep.subr.mxu0 0.0
        %322 = vmatpush1.msra.mxu0 0.0
        %323 = vmatprep.subr.mxu0 0.0
        %324 = vmatpush1.msra.mxu0 0.0
        %325 = vmatprep.subr.mxu0 0.0
        %326 = vmatpush1.msra.mxu0 0.0
        %327 = vmatprep.subr.mxu0 0.0
        %328 = vmatpush1.msra.mxu0 0.0
        %329 = vmatprep.subr.mxu0 0.0
        %330 = vmatpush1.msra.mxu0 0.0
        %331 = vmatprep.subr.mxu0 0.0
        %332 = vmatpush1.msra.mxu0 0.0
        %333 = vmatprep.subr.mxu0 0.0
        %334 = vmatpush1.msra.mxu0 0.0
        %335 = vmatprep.subr.mxu0 0.0
        %336 = vmatpush1.msra.mxu0 0.0
        %337 = vmatprep.subr.mxu0 0.0
        %338 = vmatpush1.msra.mxu0 0.0
        %339 = vmatprep.subr.mxu0 0.0
        %340 = vmatpush1.msra.mxu0 %v307
        %341 = vmatprep.subr.mxu0 0.0
        %342 = vmatpush2.msra.mxu0 0.0
        %343 = vmatprep.subr.mxu0 0.0
        %344 = vmatpush2.msra.mxu0 0.0
        %345 = vmatprep.subr.mxu0 0.0
        %346 = vmatpush2.msra.mxu0 0.0
        %347 = vmatprep.subr.mxu0 0.0
        %348 = vmatpush2.msra.mxu0 0.0
        %349 = vmatprep.subr.mxu0 0.0
        %350 = vmatpush2.msra.mxu0 0.0
        %351 = vmatprep.subr.mxu0 0.0
        %352 = vmatpush2.msra.mxu0 0.0
        %353 = vmatprep.subr.mxu0 0.0
        %354 = vmatpush2.msra.mxu0 0.0
        %355 = vmatprep.subr.mxu0 0.0
        %356 = vmatpush2.msra.mxu0 0.0
        %357 = vmatprep.subr.mxu0 0.0
        %358 = vmatpush2.msra.mxu0 0.0
        %359 = vmatprep.subr.mxu0 0.0
        %360 = vmatpush2.msra.mxu0 0.0
        %361 = vmatprep.subr.mxu0 0.0
        %362 = vmatpush2.msra.mxu0 0.0
        %363 = vmatprep.subr.mxu0 0.0
        %364 = vmatpush2.msra.mxu0 0.0
        %365 = vmatprep.subr.mxu0 0.0
        %366 = vmatpush2.msra.mxu0 0.0
        %367 = vmatprep.subr.mxu0 0.0
        %368 = vmatpush2.msra.mxu0 0.0
        %369 = vmatprep.subr.mxu0 0.0
        %370 = vmatpush2.msra.mxu0 0.0
        %371 = vmatprep.subr.mxu0 0.0
        %372 = vmatpush2.msra.mxu0 0.0
        %373 = vmatprep.mubr.f32.mxu0 0.0
        %374 = vmatmul.mubr.f32.gmra.mxu0 %v304
        %v375 = vpop.f32.mrf.mxu0
        %v376 = vadd.f32 0.0, %v375
        %v377 = vpop.f32.mrf.mxu0
        %378 = vdwg.mxu0
        %v379 = vxor.u32 %v376, 2147483648
        %v380 = vmul.f32 %v379, 1.442695
        %v381 = vpow.pop %v380
        %v382 = vadd.f32 %v381, 1.0
        %v383 = vrcp.pop %v382
        %v384 = vmul.f32 1.0, %v383
        %386 = vset.pattern.permute.xlu0 0
        %387 = vperm.xlu0 %386, %v384
        %v388 = vpop.permute.xlu0 %387
        %v390 = vunpack.c.l.s4 839922192
        %v391 = vunpack.c.0.s8 %v390
        %v392 = vlaneseq
        %v393 = vshrl.u32 %v392, 7
        %v394 = vsub.s32 %v391, %v393
        %v395 = vrot.slane %v388, %v394
        %v397 = vmul.f32 %v212, %v395
        %398 = vst [vmem:[%s211] sm:$0xff] %v397
        %s399 = sand.u32 %s97, 1
        %s400 = scalar_lea.sflag [#allocation4], %s399
        %s401 = sand.u32 %s97, 1
        %s402 = smul.addr %s401, 8
        %s403 = scalar_lea.vmem [#allocation8], %s402
        // Predicated region
        $region45: #{tpu_custom_call.1} parent=31 // pred_check
          %p404 = pneg %p107
        $region46: #{tpu_custom_call.1} parent=31 // pred_check_branch
          %406 = sbr.rel (%p404) target = $region48
        $region47: #{tpu_custom_call.1} parent=31 // pred_region
          %s408 = ssub.s32 128, 128
          %409 = vsyncadd %s400, %s408
          %s410 = smul.addr %s21, 2
          %s411 = smul.addr %s410, 64
          %s412 = scalar_lea.hbm %s3, %s411
          %s414 = sshll.u32 %s403, 4
          %s415 = int_to_ptr.vmem [resolvable:$true] %s414
          %417 = dma.vmem_to_hbm [thread:$0]  %s415, 128, %s412, %s400
        $region48: #{tpu_custom_call.1} parent=31 // pred_fallthru
          _
      $region32: #{tpu_custom_call.1} parent=5 // pred_fallthru
        _
      %p418 = scmp.le.s32.totalorder 2, %s16
      // Predicated region
      $region49: #{tpu_custom_call.1} parent=5 // pred_check
        %p419 = pneg %p418
      $region50: #{tpu_custom_call.1} parent=5 // pred_check_branch
        %421 = sbr.rel (%p419) target = $region52
      $region51: #{tpu_custom_call.1} parent=5 // pred_region
        %s422 = ssub.s32 %s16, 2
        // Predicated region
        $region53: #{tpu_custom_call.1} parent=51 // pred_check
          %p423 = pneg %p113
        $region54: #{tpu_custom_call.1} parent=51 // pred_check_branch
          %425 = sbr.rel (%p423) target = $region56
        $region55: #{tpu_custom_call.1} parent=51 // pred_region
          %s426 = sand.u32 %s98, 1
          %s427 = scalar_lea.sflag [#allocation4], %s426
          %s428 = sand.u32 %s98, 1
          %s429 = smul.addr %s428, 8
          %s430 = scalar_lea.vmem [#allocation8], %s429
          %431 = dma.done %s427, 128
        $region56: #{tpu_custom_call.1} parent=51 // pred_fallthru
          _
      $region52: #{tpu_custom_call.1} parent=5 // pred_fallthru
        _
    $region6: #{tpu_custom_call.1} parent=1 // loop_footer
      %s20 = sadd.s32 1, %s16
    $region7: #{tpu_custom_call.1} parent=1 // loop_footer_branch
      %15 = sbr.rel target = $region3
    $region8: #{tpu_custom_call.1} parent=1 // loop_exit
      _
    %432 = vsyncpa [#allocation3], 1
    %s433 = scalar_lea.sflag [#allocation3], 1
    %434 = vsyncpa %s433, 1
    %435 = vsyncpa [#allocation6], 1
    %436 = vsyncpa [#allocation4], 1
    %s437 = scalar_lea.sflag [#allocation4], 1
    %438 = vsyncpa %s437, 1

</llo_original>
